<compile_context>
chip_gen: v7x
topology: tpu7x:2x2x1
jax: 0.10.0
libtpu: 0.0.40
codegen_flags: <defaults>
</compile_context>

<pallas_src>
import functools

import jax
import jax.numpy as jnp
from jax.experimental import pallas as pl
from jax.experimental.pallas import tpu as pltpu


_TILE_B_MAX = 512            # 512-1024 rows/tile amortizes ~0.35us/step overhead
_MATMUL_DTYPE = jnp.bfloat16  # MXU-native on v5e/v6e/v7x; accumulate in f32
_BN_EPS = 1e-5


def _round_up(x, m):
    return (x + m - 1) // m * m


def critic_mlp_kernel(x_ref,
                      w1_ref, b1_ref,
                      w2_ref, b2_ref,
                      w3_ref, b3_ref,
                      w4_ref, b4_ref,
                      v_ref):
    """One batch tile of the MLP, feature-major: x is (n_states, TILE_B)."""
    x = x_ref[...]                                                   # bf16

    h = jnp.dot(w1_ref[...], x,
                preferred_element_type=jnp.float32) + b1_ref[...]    # (H, TILE_B) f32
    h = jnp.maximum(h, 0.0)

    h = jnp.dot(w2_ref[...], h.astype(w2_ref.dtype),
                preferred_element_type=jnp.float32) + b2_ref[...]
    h = jnp.maximum(h, 0.0)

    h = jnp.dot(w3_ref[...], h.astype(w3_ref.dtype),
                preferred_element_type=jnp.float32) + b3_ref[...]
    h = jnp.maximum(h, 0.0)

    # Final layer has a single output feature: VPU multiply + sublane reduce
    # instead of an MXU pass with M=1.  (b4 cancels in the BatchNorm mean, but
    # it is kept -- one broadcast add -- for exact module semantics.)
    v_ref[...] = jnp.sum(h * w4_ref[...], axis=0, keepdims=True) + b4_ref[...]


def critic_bn_kernel(v_ref, gamma_ref, beta_ref, out_ref, *, n_valid):
    """BatchNorm1d(1), training mode, over the whole (padded) batch slab."""
    v = v_ref[...]                                                   # (1, B_pad) f32
    # Padded batch columns (index >= n_valid) must not contribute to stats.
    col = jax.lax.broadcasted_iota(jnp.int32, v.shape, dimension=1)
    mask = col < n_valid
    inv_n = jnp.float32(1.0 / n_valid)

    mean = jnp.sum(jnp.where(mask, v, 0.0)) * inv_n
    centered = v - mean
    var = jnp.sum(jnp.where(mask, centered * centered, 0.0)) * inv_n  # biased var
    v_hat = centered * jax.lax.rsqrt(var + _BN_EPS)

    out_ref[...] = v_hat * gamma_ref[...] + beta_ref[...]


def critic_forward(x, params):
    """x: (B, n_states) f32.  Returns (B, 1) f32 (training-mode BN output)."""
    B, n_states = x.shape
    H = params["w1"].shape[0]

    tile_b = min(_TILE_B_MAX, _round_up(B, 128))
    b_padded = _round_up(B, tile_b)
    num_tiles = b_padded // tile_b

    # Layout plumbing (wrapper side): feature-major + bf16 + pad batch so the
    # kernel sees lane-dense, (8,128)-aligned tiles.
    x_t = jnp.pad(x.T.astype(_MATMUL_DTYPE), ((0, 0), (0, b_padded - B)))

    const = lambda i: (0, 0)   # weights/biases: resident across all batch tiles

    flops = 2 * b_padded * (n_states * H + 2 * H * H + H)
    param_bytes = sum(
        int(params[k].size) * params[k].dtype.itemsize
        for k in ("w1", "b1", "w2", "b2", "w3", "b3", "w4", "b4"))
    bytes_accessed = int(x_t.size) * x_t.dtype.itemsize + b_padded * 4 + param_bytes

    # ---- Pass 1: batch-tiled MLP producing the lane-dense value slab --------
    v_slab = pl.pallas_call(
        critic_mlp_kernel,
        out_shape=jax.ShapeDtypeStruct((1, b_padded), jnp.float32),
        grid=(num_tiles,),
        in_specs=[
            pl.BlockSpec((n_states, tile_b), lambda i: (0, i)),  # x   (streamed)
            pl.BlockSpec((H, n_states), const),                  # w1  (resident)
            pl.BlockSpec((H, 1), const),                         # b1
            pl.BlockSpec((H, H), const),                         # w2
            pl.BlockSpec((H, 1), const),                         # b2
            pl.BlockSpec((H, H), const),                         # w3
            pl.BlockSpec((H, 1), const),                         # b3
            pl.BlockSpec((H, 1), const),                         # w4 (column)
            pl.BlockSpec((1, 1), const),                         # b4
        ],
        out_specs=pl.BlockSpec((1, tile_b), lambda i: (0, i)),
        compiler_params=pltpu.CompilerParams(
            dimension_semantics=("parallel",),        # megacore-shard the batch
            vmem_limit_bytes=32 * 1024 * 1024,        # explicit, portable budget
        ),
        cost_estimate=pl.CostEstimate(
            flops=flops, transcendentals=0, bytes_accessed=bytes_accessed),
    )(x_t,
      params["w1"], params["b1"],
      params["w2"], params["b2"],
      params["w3"], params["b3"],
      params["w4"], params["b4"])

    # ---- Pass 2: full-batch BatchNorm1d (padding masked out) ----------------
    vmem = pl.BlockSpec(memory_space=pltpu.MemorySpace.VMEM)
    out_slab = pl.pallas_call(
        functools.partial(critic_bn_kernel, n_valid=B),
        out_shape=jax.ShapeDtypeStruct((1, b_padded), jnp.float32),
        in_specs=[vmem, vmem, vmem],
        out_specs=vmem,
    )(v_slab, params["gamma"], params["beta"])

    return out_slab[0, :B].reshape(B, 1)


def init_params(key, n_states, hidden_dim):
    """PyTorch-Linear-style init (U(-1/sqrt(fan_in), +)), feature-major layout.

    Weights are stored as (out_features, in_features) -- PyTorch's native
    layout -- since the kernel computes W @ x_T.  Hidden-layer weights are
    bf16 (MXU inputs); biases / last layer / BN affine stay f32.
    """
    def linear(k, fan_in, fan_out, w_dtype=jnp.float32):
        kw, kb = jax.random.split(k)
        bound = 1.0 / (fan_in ** 0.5)
        w = jax.random.uniform(kw, (fan_out, fan_in), jnp.float32, -bound, bound)
        b = jax.random.uniform(kb, (fan_out, 1), jnp.float32, -bound, bound)
        return w.astype(w_dtype), b

    k1, k2, k3, k4 = jax.random.split(key, 4)
    w1, b1 = linear(k1, n_states, hidden_dim, _MATMUL_DTYPE)
    w2, b2 = linear(k2, hidden_dim, hidden_dim, _MATMUL_DTYPE)
    w3, b3 = linear(k3, hidden_dim, hidden_dim, _MATMUL_DTYPE)
    w4, b4 = linear(k4, hidden_dim, 1, jnp.float32)   # (1, H) PyTorch layout
    return {
        "w1": w1, "b1": b1,
        "w2": w2, "b2": b2,
        "w3": w3, "b3": b3,
        "w4": w4.T,                    # stored as (H, 1) column for the VPU reduce
        "b4": b4,                      # (1, 1)
        # BatchNorm1d(1) affine params (default init: weight=1, bias=0)
        "gamma": jnp.ones((1, 1), jnp.float32),
        "beta": jnp.zeros((1, 1), jnp.float32),
    }


if __name__ == "__main__":
    key = jax.random.PRNGKey(0)
    k_params, k_x = jax.random.split(key)

    n_states = 16
    hidden_dim = 32
    batch = 64                        # > 1 required for training-mode BatchNorm1d

    params = init_params(k_params, n_states, hidden_dim)
    x = jax.random.normal(k_x, (batch, n_states), jnp.float32)

    out = critic_forward(x, params)
    jax.block_until_ready(out)
    assert out.shape == (batch, 1)
    assert out.dtype == jnp.float32
    assert bool(jnp.all(jnp.isfinite(out)))

    # Also exercise the multi-tile (gridded / pipelined / padded) path.
    batch_big = 3 * _TILE_B_MAX + 37
    x_big = jax.random.normal(k_x, (batch_big, n_states), jnp.float32)
    out_big = critic_forward(x_big, params)
    jax.block_until_ready(out_big)
    assert out_big.shape == (batch_big, 1)
    assert bool(jnp.all(jnp.isfinite(out_big)))

    print("KERNEL_OK")
</pallas_src>

<mosaic_0001>
module attributes {stable_mosaic.version = 11 : i64} {
  func.func @critic_mlp_kernel(%arg0: i32, %arg1: memref<16x128xbf16, #tpu.memory_space<vmem>>, %arg2: memref<32x16xbf16, #tpu.memory_space<vmem>>, %arg3: memref<32x1xf32, #tpu.memory_space<vmem>>, %arg4: memref<32x32xbf16, #tpu.memory_space<vmem>>, %arg5: memref<32x1xf32, #tpu.memory_space<vmem>>, %arg6: memref<32x32xbf16, #tpu.memory_space<vmem>>, %arg7: memref<32x1xf32, #tpu.memory_space<vmem>>, %arg8: memref<32x1xf32, #tpu.memory_space<vmem>>, %arg9: memref<1x1xf32, #tpu.memory_space<vmem>>, %arg10: memref<1x128xf32, #tpu.memory_space<vmem>>) attributes {dimension_semantics = [#tpu.dimension_semantics<parallel>], iteration_bounds = array<i64: 1>, scalar_prefetch = 0 : i64, scratch_operands = 0 : i64, tpu.core_type = #tpu.core_type<tc>, window_params = [{transform_indices = @transform_0, window_bounds = array<i64: 16, 128>}, {pipeline_mode = #tpu.pipeline_mode<synchronous>, transform_indices = @transform_1, window_bounds = array<i64: 32, 16>}, {pipeline_mode = #tpu.pipeline_mode<synchronous>, transform_indices = @transform_2, window_bounds = array<i64: 32, 1>}, {pipeline_mode = #tpu.pipeline_mode<synchronous>, transform_indices = @transform_3, window_bounds = array<i64: 32, 32>}, {pipeline_mode = #tpu.pipeline_mode<synchronous>, transform_indices = @transform_4, window_bounds = array<i64: 32, 1>}, {pipeline_mode = #tpu.pipeline_mode<synchronous>, transform_indices = @transform_5, window_bounds = array<i64: 32, 32>}, {pipeline_mode = #tpu.pipeline_mode<synchronous>, transform_indices = @transform_6, window_bounds = array<i64: 32, 1>}, {pipeline_mode = #tpu.pipeline_mode<synchronous>, transform_indices = @transform_7, window_bounds = array<i64: 32, 1>}, {pipeline_mode = #tpu.pipeline_mode<synchronous>, transform_indices = @transform_8, window_bounds = array<i64: 1, 1>}, {transform_indices = @transform_9, window_bounds = array<i64: 1, 128>}]} {
    %c0 = arith.constant 0 : index
    %c0_0 = arith.constant 0 : index
    %0 = vector.load %arg1[%c0, %c0_0] : memref<16x128xbf16, #tpu.memory_space<vmem>>, vector<16x128xbf16>
    %c0_1 = arith.constant 0 : index
    %c0_2 = arith.constant 0 : index
    %1 = vector.load %arg2[%c0_1, %c0_2] : memref<32x16xbf16, #tpu.memory_space<vmem>>, vector<32x16xbf16>
    %cst = arith.constant dense<0.000000e+00> : vector<32x128xf32>
    %2 = tpu.matmul %1, %0, %cst {dimension_numbers = #tpu.dot_dimension_numbers<[1], [0], [0], [1], [0, 0, 1, 1], [], []>} : vector<32x16xbf16>, vector<16x128xbf16>, vector<32x128xf32> -> vector<32x128xf32>
    %c0_3 = arith.constant 0 : index
    %c0_4 = arith.constant 0 : index
    %3 = vector.load %arg3[%c0_3, %c0_4] : memref<32x1xf32, #tpu.memory_space<vmem>>, vector<32x1xf32>
    %4 = vector.broadcast %3 : vector<32x1xf32> to vector<32x128xf32>
    %5 = arith.addf %2, %4 : vector<32x128xf32>
    %cst_5 = arith.constant 0.000000e+00 : f32
    %6 = vector.broadcast %cst_5 : f32 to vector<32x128xf32>
    %7 = arith.maximumf %5, %6 : vector<32x128xf32>
    %c0_6 = arith.constant 0 : index
    %c0_7 = arith.constant 0 : index
    %8 = vector.load %arg4[%c0_6, %c0_7] : memref<32x32xbf16, #tpu.memory_space<vmem>>, vector<32x32xbf16>
    %9 = arith.truncf %7 : vector<32x128xf32> to vector<32x128xbf16>
    %cst_8 = arith.constant dense<0.000000e+00> : vector<32x128xf32>
    %10 = tpu.matmul %8, %9, %cst_8 {dimension_numbers = #tpu.dot_dimension_numbers<[1], [0], [0], [1], [0, 0, 1, 1], [], []>} : vector<32x32xbf16>, vector<32x128xbf16>, vector<32x128xf32> -> vector<32x128xf32>
    %c0_9 = arith.constant 0 : index
    %c0_10 = arith.constant 0 : index
    %11 = vector.load %arg5[%c0_9, %c0_10] : memref<32x1xf32, #tpu.memory_space<vmem>>, vector<32x1xf32>
    %12 = vector.broadcast %11 : vector<32x1xf32> to vector<32x128xf32>
    %13 = arith.addf %10, %12 : vector<32x128xf32>
    %cst_11 = arith.constant 0.000000e+00 : f32
    %14 = vector.broadcast %cst_11 : f32 to vector<32x128xf32>
    %15 = arith.maximumf %13, %14 : vector<32x128xf32>
    %c0_12 = arith.constant 0 : index
    %c0_13 = arith.constant 0 : index
    %16 = vector.load %arg6[%c0_12, %c0_13] : memref<32x32xbf16, #tpu.memory_space<vmem>>, vector<32x32xbf16>
    %17 = arith.truncf %15 : vector<32x128xf32> to vector<32x128xbf16>
    %cst_14 = arith.constant dense<0.000000e+00> : vector<32x128xf32>
    %18 = tpu.matmul %16, %17, %cst_14 {dimension_numbers = #tpu.dot_dimension_numbers<[1], [0], [0], [1], [0, 0, 1, 1], [], []>} : vector<32x32xbf16>, vector<32x128xbf16>, vector<32x128xf32> -> vector<32x128xf32>
    %c0_15 = arith.constant 0 : index
    %c0_16 = arith.constant 0 : index
    %19 = vector.load %arg7[%c0_15, %c0_16] : memref<32x1xf32, #tpu.memory_space<vmem>>, vector<32x1xf32>
    %20 = vector.broadcast %19 : vector<32x1xf32> to vector<32x128xf32>
    %21 = arith.addf %18, %20 : vector<32x128xf32>
    %cst_17 = arith.constant 0.000000e+00 : f32
    %22 = vector.broadcast %cst_17 : f32 to vector<32x128xf32>
    %23 = arith.maximumf %21, %22 : vector<32x128xf32>
    %c0_18 = arith.constant 0 : index
    %c0_19 = arith.constant 0 : index
    %24 = vector.load %arg8[%c0_18, %c0_19] : memref<32x1xf32, #tpu.memory_space<vmem>>, vector<32x1xf32>
    %25 = vector.broadcast %24 : vector<32x1xf32> to vector<32x128xf32>
    %26 = arith.mulf %23, %25 : vector<32x128xf32>
    %cst_20 = arith.constant dense<0.000000e+00> : vector<128xf32>
    %27 = vector.multi_reduction <add>, %26, %cst_20 [0] : vector<32x128xf32> to vector<128xf32>
    %28 = vector.shape_cast %27 : vector<128xf32> to vector<1x128xf32>
    %c0_21 = arith.constant 0 : index
    %c0_22 = arith.constant 0 : index
    %29 = vector.load %arg9[%c0_21, %c0_22] : memref<1x1xf32, #tpu.memory_space<vmem>>, vector<1x1xf32>
    %30 = vector.broadcast %29 : vector<1x1xf32> to vector<1x128xf32>
    %31 = arith.addf %28, %30 : vector<1x128xf32>
    %c0_23 = arith.constant 0 : index
    %c0_24 = arith.constant 0 : index
    %32 = vector.load %arg10[%c0_23, %c0_24] : memref<1x128xf32, #tpu.memory_space<vmem>>, vector<1x128xf32>
    tpu.vector_store %arg10[%c0_23, %c0_24], %31 {strides = array<i32>} : memref<1x128xf32, #tpu.memory_space<vmem>>, vector<1x128xf32>,
    return
  }
  func.func @transform_0(%arg0: i32) -> (i32, i32) {
    %c0_i32 = arith.constant 0 : i32
    %c0_i32_0 = arith.constant 0 : i32
    return %c0_i32, %arg0 : i32, i32
  }
  func.func @transform_1(%arg0: i32) -> (i32, i32) {
    %c0_i32 = arith.constant 0 : i32
    %c0_i32_0 = arith.constant 0 : i32
    %c0_i32_1 = arith.constant 0 : i32
    return %c0_i32, %c0_i32_0 : i32, i32
  }
  func.func @transform_2(%arg0: i32) -> (i32, i32) {
    %c0_i32 = arith.constant 0 : i32
    %c0_i32_0 = arith.constant 0 : i32
    %c0_i32_1 = arith.constant 0 : i32
    return %c0_i32, %c0_i32_0 : i32, i32
  }
  func.func @transform_3(%arg0: i32) -> (i32, i32) {
    %c0_i32 = arith.constant 0 : i32
    %c0_i32_0 = arith.constant 0 : i32
    %c0_i32_1 = arith.constant 0 : i32
    return %c0_i32, %c0_i32_0 : i32, i32
  }
  func.func @transform_4(%arg0: i32) -> (i32, i32) {
    %c0_i32 = arith.constant 0 : i32
    %c0_i32_0 = arith.constant 0 : i32
    %c0_i32_1 = arith.constant 0 : i32
    return %c0_i32, %c0_i32_0 : i32, i32
  }
  func.func @transform_5(%arg0: i32) -> (i32, i32) {
    %c0_i32 = arith.constant 0 : i32
    %c0_i32_0 = arith.constant 0 : i32
    %c0_i32_1 = arith.constant 0 : i32
    return %c0_i32, %c0_i32_0 : i32, i32
  }
  func.func @transform_6(%arg0: i32) -> (i32, i32) {
    %c0_i32 = arith.constant 0 : i32
    %c0_i32_0 = arith.constant 0 : i32
    %c0_i32_1 = arith.constant 0 : i32
    return %c0_i32, %c0_i32_0 : i32, i32
  }
  func.func @transform_7(%arg0: i32) -> (i32, i32) {
    %c0_i32 = arith.constant 0 : i32
    %c0_i32_0 = arith.constant 0 : i32
    %c0_i32_1 = arith.constant 0 : i32
    return %c0_i32, %c0_i32_0 : i32, i32
  }
  func.func @transform_8(%arg0: i32) -> (i32, i32) {
    %c0_i32 = arith.constant 0 : i32
    %c0_i32_0 = arith.constant 0 : i32
    %c0_i32_1 = arith.constant 0 : i32
    return %c0_i32, %c0_i32_0 : i32, i32
  }
  func.func @transform_9(%arg0: i32) -> (i32, i32) {
    %c0_i32 = arith.constant 0 : i32
    %c0_i32_0 = arith.constant 0 : i32
    return %c0_i32, %arg0 : i32, i32
  }
}

</mosaic_0001>

<llo_original>
// kernel: tpu_custom_call.1
$region0: #{tpu_custom_call.1}
  #allocation0 [shape = 'u32[]', space=smem, size = 0x4, offset = 0x4, fixed_abs, tag = 'smem constant byte address 0x4 - core index']
  #allocation1 [shape = 'u32[144,128]{1,0:T(1,128)}', space=vmem, size = 0x12000, scoped, tag = 'internal scratch']
  #allocation2 [shape = 'f32[1,1]{1,0:T(1,128)S(1)}', space=vmem, size = 0x200, scoped, tag = 'scoped memory for tpu_custom_call.1']
  %s0 = inlined_call_operand.vmem [shape: bf16[16,128], index: 0, kind: input, shape index: {}]
  %s1 = inlined_call_operand.vmem [shape: bf16[32,16], index: 1, kind: input, shape index: {}]
  %s2 = inlined_call_operand.vmem [shape: f32[32,1], index: 2, kind: input, shape index: {}]
  %s3 = inlined_call_operand.vmem [shape: bf16[32,32], index: 3, kind: input, shape index: {}]
  %s4 = inlined_call_operand.vmem [shape: f32[32,1], index: 4, kind: input, shape index: {}]
  %s5 = inlined_call_operand.vmem [shape: bf16[32,32], index: 5, kind: input, shape index: {}]
  %s6 = inlined_call_operand.vmem [shape: f32[32,1], index: 6, kind: input, shape index: {}]
  %s7 = inlined_call_operand.vmem [shape: f32[32,1], index: 7, kind: input, shape index: {}]
  %s8 = inlined_call_operand.<no memory space> [shape: f32[1,1], index: 8, kind: input, shape index: {}]
  %s9 = inlined_call_operand.hbm [shape: f32[1,128], index: 9, kind: output, shape index: {}]
  %s10 = sld [smem:[#allocation0]]
  $region46: #{tpu_custom_call.1} parent=0
    _
  %s12 = ssub.s32 1, %s10
  %s13 = scalar_select 0, %s12, %s10
  %v14 = vstv %s8
  %15 = vst [vmem:[#allocation2] sm:$0x1] %v14
  $region1: #{tpu_custom_call.1} parent=0
    #allocation3 [shape = 'u8[512]{0}', space=vmem, size = 0x400, scoped, tag = 'output window, operand 0, single buffered']
    #allocation4 [shape = 's32[1]{0}', space=sflag, size = 0x4, scoped, tag = 'scoped memory for tpu_custom_call.1']
    %16 = vsyncpa [#allocation4], 0
    // Predicated region
    $region2: #{tpu_custom_call.1} parent=1 // pred_check
      _
    $region3: #{tpu_custom_call.1} parent=1 // pred_check_branch
      %18 = sbr.rel (0) target = $region5
    $region4: #{tpu_custom_call.1} parent=1 // pred_region
      _
    $region5: #{tpu_custom_call.1} parent=1 // pred_fallthru
      _
    // Predicated region
    $region6: #{tpu_custom_call.1} parent=1 // pred_check
      _
    $region7: #{tpu_custom_call.1} parent=1 // pred_check_branch
      %20 = sbr.rel (0) target = $region9
    $region8: #{tpu_custom_call.1} parent=1 // pred_region
      _
    $region9: #{tpu_custom_call.1} parent=1 // pred_fallthru
      _
    // Predicated region
    $region10: #{tpu_custom_call.1} parent=1 // pred_check
      _
    $region11: #{tpu_custom_call.1} parent=1 // pred_check_branch
      %22 = sbr.rel (0) target = $region13
    $region12: #{tpu_custom_call.1} parent=1 // pred_region
      _
    $region13: #{tpu_custom_call.1} parent=1 // pred_fallthru
      _
    // Predicated region
    $region14: #{tpu_custom_call.1} parent=1 // pred_check
      _
    $region15: #{tpu_custom_call.1} parent=1 // pred_check_branch
      %24 = sbr.rel (0) target = $region17
    $region16: #{tpu_custom_call.1} parent=1 // pred_region
      _
    $region17: #{tpu_custom_call.1} parent=1 // pred_fallthru
      _
    // Predicated region
    $region18: #{tpu_custom_call.1} parent=1 // pred_check
      _
    $region19: #{tpu_custom_call.1} parent=1 // pred_check_branch
      %26 = sbr.rel (0) target = $region21
    $region20: #{tpu_custom_call.1} parent=1 // pred_region
      _
    $region21: #{tpu_custom_call.1} parent=1 // pred_fallthru
      _
    // Predicated region
    $region22: #{tpu_custom_call.1} parent=1 // pred_check
      _
    $region23: #{tpu_custom_call.1} parent=1 // pred_check_branch
      %28 = sbr.rel (0) target = $region25
    $region24: #{tpu_custom_call.1} parent=1 // pred_region
      _
    $region25: #{tpu_custom_call.1} parent=1 // pred_fallthru
      _
    // Predicated region
    $region26: #{tpu_custom_call.1} parent=1 // pred_check
      _
    $region27: #{tpu_custom_call.1} parent=1 // pred_check_branch
      %30 = sbr.rel (0) target = $region29
    $region28: #{tpu_custom_call.1} parent=1 // pred_region
      _
    $region29: #{tpu_custom_call.1} parent=1 // pred_fallthru
      _
    // Predicated region
    $region30: #{tpu_custom_call.1} parent=1 // pred_check
      _
    $region31: #{tpu_custom_call.1} parent=1 // pred_check_branch
      %32 = sbr.rel (0) target = $region33
    $region32: #{tpu_custom_call.1} parent=1 // pred_region
      _
    $region33: #{tpu_custom_call.1} parent=1 // pred_fallthru
      _
    // Predicated region
    $region34: #{tpu_custom_call.1} parent=1 // pred_check
      _
    $region35: #{tpu_custom_call.1} parent=1 // pred_check_branch
      %34 = sbr.rel (0) target = $region37
    $region36: #{tpu_custom_call.1} parent=1 // pred_region
      _
    $region37: #{tpu_custom_call.1} parent=1 // pred_fallthru
      _
    %v36 = vld [vmem:[%s0] sm:$0xf]
    %v37 = vld [vmem:[%s0 + $0x4] sm:$0xf]
    %v38 = vld [vmem:[%s1] sm:$0xf]
    %v39 = vld [vmem:[%s1 + $0x4] sm:$0xf]
    %v40 = vld [vmem:[%s1 + $0x8] sm:$0xf]
    %v41 = vld [vmem:[%s1 + $0xc] sm:$0xf]
    %v42 = vld [vmem:[%s2] sm:$0xff]
    %v43 = vld [vmem:[%s2 + $0x8] sm:$0xff]
    %v44 = vld [vmem:[%s2 + $0x10] sm:$0xff]
    %v45 = vld [vmem:[%s2 + $0x18] sm:$0xff]
    %47 = vset.pattern.permute.xlu0 0
    %48 = vperm.xlu0 %47, %v42
    %v49 = vpop.permute.xlu0 %48
    %52 = vset.pattern.permute.xlu0 0
    %53 = vperm.xlu0 %52, %v43
    %v54 = vpop.permute.xlu0 %53
    %57 = vset.pattern.permute.xlu0 0
    %58 = vperm.xlu0 %57, %v44
    %v59 = vpop.permute.xlu0 %58
    %62 = vset.pattern.permute.xlu0 0
    %63 = vperm.xlu0 %62, %v45
    %v64 = vpop.permute.xlu0 %63
    %v70 = vunpack.c.l.b16 %v38
    %v71 = vunpack.c.l.b16 %v39
    %v72 = vunpack.c.l.b16 %v40
    %v73 = vunpack.c.l.b16 %v41
    %v74 = vpack.c.b16 %v71, %v70
    %v75 = vpack.c.b16 %v73, %v72
    %v78 = vunpack.c.l.b16 %v36
    %v79 = vunpack.c.l.b16 %v37
    %v80 = vpack.c.b16 %v79, %v78
    %vm82 = vcmask 130048
    %v84 = vsel %vm82, %v74, 0
    %v87 = vsel %vm82, %v75, 0
    %89 = vmatprep.subr.bf16.mxu0 0
    %90 = vmatpush1.bf16.msra.mxu0 %v80
    %91 = vmatprep.subr.bf16.mxu0 0
    %92 = vmatpush1.bf16.msra.mxu0 0
    %93 = vmatprep.subr.bf16.mxu0 0
    %94 = vmatpush1.bf16.msra.mxu0 0
    %95 = vmatprep.subr.bf16.mxu0 0
    %96 = vmatpush1.bf16.msra.mxu0 0
    %97 = vmatprep.subr.bf16.mxu0 0
    %98 = vmatpush1.bf16.msra.mxu0 0
    %99 = vmatprep.subr.bf16.mxu0 0
    %100 = vmatpush1.bf16.msra.mxu0 0
    %101 = vmatprep.subr.bf16.mxu0 0
    %102 = vmatpush1.bf16.msra.mxu0 0
    %103 = vmatprep.subr.bf16.mxu0 0
    %104 = vmatpush1.bf16.msra.mxu0 0
    %105 = vmatprep.subr.bf16.mxu0 0
    %106 = vmatpush1.bf16.msra.mxu0 0
    %107 = vmatprep.subr.bf16.mxu0 0
    %108 = vmatpush1.bf16.msra.mxu0 0
    %109 = vmatprep.subr.bf16.mxu0 0
    %110 = vmatpush1.bf16.msra.mxu0 0
    %111 = vmatprep.subr.bf16.mxu0 0
    %112 = vmatpush1.bf16.msra.mxu0 0
    %113 = vmatprep.subr.bf16.mxu0 0
    %114 = vmatpush1.bf16.msra.mxu0 0
    %115 = vmatprep.subr.bf16.mxu0 0
    %116 = vmatpush1.bf16.msra.mxu0 0
    %117 = vmatprep.subr.bf16.mxu0 0
    %118 = vmatpush1.bf16.msra.mxu0 0
    %119 = vmatprep.subr.bf16.mxu0 0
    %120 = vmatpush1.bf16.msra.mxu0 0
    %121 = vmatprep.mubr.bf16.mxu0 0
    %122 = vmatmul.mubr.bf16.gmra.mrb[0].mxu0 %v84
    %v123 = vpop.f32.mrb[0].mxu0
    %v124 = vadd.f32 %v49, %v123
    %v125 = vpop.f32.mrb[0].mxu0
    %v126 = vpop.f32.mrb[0].mxu0
    %v127 = vadd.f32 %v54, %v126
    %v128 = vpop.f32.mrb[0].mxu0
    %129 = vmatprep.mubr.bf16.mxu0 0
    %130 = vmatmul.mubr.bf16.gmra.mrb[0].mxu0 %v87
    %v131 = vpop.f32.mrb[0].mxu0
    %v132 = vadd.f32 %v59, %v131
    %v133 = vpop.f32.mrb[0].mxu0
    %v134 = vpop.f32.mrb[0].mxu0
    %v135 = vadd.f32 %v64, %v134
    %v136 = vpop.f32.mrb[0].mxu0
    %137 = vdwg.mxu0
    %v138 = vmax.f32 %v124, 0.0
    %v139 = vmax.f32 %v127, 0.0
    %v140 = vmax.f32 %v132, 0.0
    %v141 = vmax.f32 %v135, 0.0
    %v142 = vld [vmem:[%s3] sm:$0xf]
    %v143 = vld [vmem:[%s3 + $0x4] sm:$0xf]
    %v144 = vld [vmem:[%s3 + $0x8] sm:$0xf]
    %v145 = vld [vmem:[%s3 + $0xc] sm:$0xf]
    %v146 = vpack.c.bf16 %v139, %v138
    %v147 = vpack.c.bf16 %v141, %v140
    %v148 = vld [vmem:[%s4] sm:$0xff]
    %v149 = vld [vmem:[%s4 + $0x8] sm:$0xff]
    %v150 = vld [vmem:[%s4 + $0x10] sm:$0xff]
    %v151 = vld [vmem:[%s4 + $0x18] sm:$0xff]
    %153 = vset.pattern.permute.xlu0 0
    %154 = vperm.xlu0 %153, %v148
    %v155 = vpop.permute.xlu0 %154
    %158 = vset.pattern.permute.xlu0 0
    %159 = vperm.xlu0 %158, %v149
    %v160 = vpop.permute.xlu0 %159
    %163 = vset.pattern.permute.xlu0 0
    %164 = vperm.xlu0 %163, %v150
    %v165 = vpop.permute.xlu0 %164
    %168 = vset.pattern.permute.xlu0 0
    %169 = vperm.xlu0 %168, %v151
    %v170 = vpop.permute.xlu0 %169
    %v176 = vunpack.c.l.b16 %v142
    %v177 = vunpack.c.l.b16 %v143
    %v178 = vunpack.c.l.b16 %v144
    %v179 = vunpack.c.l.b16 %v145
    %v180 = vpack.c.b16 %v177, %v176
    %v181 = vpack.c.b16 %v179, %v178
    %vm182 = vcmask 261120
    %v184 = vsel %vm182, %v180, 0
    %v187 = vsel %vm182, %v181, 0
    %189 = vmatprep.subr.bf16.mxu0 0
    %190 = vmatpush1.bf16.msra.mxu0 %v146
    %191 = vmatprep.subr.bf16.mxu0 0
    %192 = vmatpush1.bf16.msra.mxu0 %v147
    %193 = vmatprep.subr.bf16.mxu0 0
    %194 = vmatpush1.bf16.msra.mxu0 0
    %195 = vmatprep.subr.bf16.mxu0 0
    %196 = vmatpush1.bf16.msra.mxu0 0
    %197 = vmatprep.subr.bf16.mxu0 0
    %198 = vmatpush1.bf16.msra.mxu0 0
    %199 = vmatprep.subr.bf16.mxu0 0
    %200 = vmatpush1.bf16.msra.mxu0 0
    %201 = vmatprep.subr.bf16.mxu0 0
    %202 = vmatpush1.bf16.msra.mxu0 0
    %203 = vmatprep.subr.bf16.mxu0 0
    %204 = vmatpush1.bf16.msra.mxu0 0
    %205 = vmatprep.subr.bf16.mxu0 0
    %206 = vmatpush1.bf16.msra.mxu0 0
    %207 = vmatprep.subr.bf16.mxu0 0
    %208 = vmatpush1.bf16.msra.mxu0 0
    %209 = vmatprep.subr.bf16.mxu0 0
    %210 = vmatpush1.bf16.msra.mxu0 0
    %211 = vmatprep.subr.bf16.mxu0 0
    %212 = vmatpush1.bf16.msra.mxu0 0
    %213 = vmatprep.subr.bf16.mxu0 0
    %214 = vmatpush1.bf16.msra.mxu0 0
    %215 = vmatprep.subr.bf16.mxu0 0
    %216 = vmatpush1.bf16.msra.mxu0 0
    %217 = vmatprep.subr.bf16.mxu0 0
    %218 = vmatpush1.bf16.msra.mxu0 0
    %219 = vmatprep.subr.bf16.mxu0 0
    %220 = vmatpush1.bf16.msra.mxu0 0
    %221 = vmatprep.mubr.bf16.mxu0 0
    %222 = vmatmul.mubr.bf16.gmra.mrb[0].mxu0 %v184
    %v223 = vpop.f32.mrb[0].mxu0
    %v224 = vadd.f32 %v155, %v223
    %v225 = vpop.f32.mrb[0].mxu0
    %v226 = vpop.f32.mrb[0].mxu0
    %v227 = vadd.f32 %v160, %v226
    %v228 = vpop.f32.mrb[0].mxu0
    %229 = vmatprep.mubr.bf16.mxu0 0
    %230 = vmatmul.mubr.bf16.gmra.mrb[0].mxu0 %v187
    %v231 = vpop.f32.mrb[0].mxu0
    %v232 = vadd.f32 %v165, %v231
    %v233 = vpop.f32.mrb[0].mxu0
    %v234 = vpop.f32.mrb[0].mxu0
    %v235 = vadd.f32 %v170, %v234
    %v236 = vpop.f32.mrb[0].mxu0
    %237 = vdwg.mxu0
    %v238 = vmax.f32 %v224, 0.0
    %v239 = vmax.f32 %v227, 0.0
    %v240 = vmax.f32 %v232, 0.0
    %v241 = vmax.f32 %v235, 0.0
    %v242 = vld [vmem:[%s5] sm:$0xf]
    %v243 = vld [vmem:[%s5 + $0x4] sm:$0xf]
    %v244 = vld [vmem:[%s5 + $0x8] sm:$0xf]
    %v245 = vld [vmem:[%s5 + $0xc] sm:$0xf]
    %v246 = vpack.c.bf16 %v239, %v238
    %v247 = vpack.c.bf16 %v241, %v240
    %v248 = vld [vmem:[%s6] sm:$0xff]
    %v249 = vld [vmem:[%s6 + $0x8] sm:$0xff]
    %v250 = vld [vmem:[%s6 + $0x10] sm:$0xff]
    %v251 = vld [vmem:[%s6 + $0x18] sm:$0xff]
    %253 = vset.pattern.permute.xlu0 0
    %254 = vperm.xlu0 %253, %v248
    %v255 = vpop.permute.xlu0 %254
    %258 = vset.pattern.permute.xlu0 0
    %259 = vperm.xlu0 %258, %v249
    %v260 = vpop.permute.xlu0 %259
    %263 = vset.pattern.permute.xlu0 0
    %264 = vperm.xlu0 %263, %v250
    %v265 = vpop.permute.xlu0 %264
    %268 = vset.pattern.permute.xlu0 0
    %269 = vperm.xlu0 %268, %v251
    %v270 = vpop.permute.xlu0 %269
    %v276 = vunpack.c.l.b16 %v242
    %v277 = vunpack.c.l.b16 %v243
    %v278 = vunpack.c.l.b16 %v244
    %v279 = vunpack.c.l.b16 %v245
    %v280 = vpack.c.b16 %v277, %v276
    %v281 = vpack.c.b16 %v279, %v278
    %v283 = vsel %vm182, %v280, 0
    %v286 = vsel %vm182, %v281, 0
    %288 = vmatprep.subr.bf16.mxu0 0
    %289 = vmatpush1.bf16.msra.mxu0 %v246
    %290 = vmatprep.subr.bf16.mxu0 0
    %291 = vmatpush1.bf16.msra.mxu0 %v247
    %292 = vmatprep.subr.bf16.mxu0 0
    %293 = vmatpush1.bf16.msra.mxu0 0
    %294 = vmatprep.subr.bf16.mxu0 0
    %295 = vmatpush1.bf16.msra.mxu0 0
    %296 = vmatprep.subr.bf16.mxu0 0
    %297 = vmatpush1.bf16.msra.mxu0 0
    %298 = vmatprep.subr.bf16.mxu0 0
    %299 = vmatpush1.bf16.msra.mxu0 0
    %300 = vmatprep.subr.bf16.mxu0 0
    %301 = vmatpush1.bf16.msra.mxu0 0
    %302 = vmatprep.subr.bf16.mxu0 0
    %303 = vmatpush1.bf16.msra.mxu0 0
    %304 = vmatprep.subr.bf16.mxu0 0
    %305 = vmatpush1.bf16.msra.mxu0 0
    %306 = vmatprep.subr.bf16.mxu0 0
    %307 = vmatpush1.bf16.msra.mxu0 0
    %308 = vmatprep.subr.bf16.mxu0 0
    %309 = vmatpush1.bf16.msra.mxu0 0
    %310 = vmatprep.subr.bf16.mxu0 0
    %311 = vmatpush1.bf16.msra.mxu0 0
    %312 = vmatprep.subr.bf16.mxu0 0
    %313 = vmatpush1.bf16.msra.mxu0 0
    %314 = vmatprep.subr.bf16.mxu0 0
    %315 = vmatpush1.bf16.msra.mxu0 0
    %316 = vmatprep.subr.bf16.mxu0 0
    %317 = vmatpush1.bf16.msra.mxu0 0
    %318 = vmatprep.subr.bf16.mxu0 0
    %319 = vmatpush1.bf16.msra.mxu0 0
    %320 = vmatprep.mubr.bf16.mxu0 0
    %321 = vmatmul.mubr.bf16.gmra.mrb[0].mxu0 %v283
    %v322 = vpop.f32.mrb[0].mxu0
    %v323 = vadd.f32 %v255, %v322
    %v324 = vpop.f32.mrb[0].mxu0
    %v325 = vpop.f32.mrb[0].mxu0
    %v326 = vadd.f32 %v260, %v325
    %v327 = vpop.f32.mrb[0].mxu0
    %328 = vmatprep.mubr.bf16.mxu0 0
    %329 = vmatmul.mubr.bf16.gmra.mrb[0].mxu0 %v286
    %v330 = vpop.f32.mrb[0].mxu0
    %v331 = vadd.f32 %v265, %v330
    %v332 = vpop.f32.mrb[0].mxu0
    %v333 = vpop.f32.mrb[0].mxu0
    %v334 = vadd.f32 %v270, %v333
    %v335 = vpop.f32.mrb[0].mxu0
    %336 = vdwg.mxu0
    %v337 = vmax.f32 %v323, 0.0
    %v338 = vmax.f32 %v326, 0.0
    %v339 = vmax.f32 %v331, 0.0
    %v340 = vmax.f32 %v334, 0.0
    %v341 = vld [vmem:[%s7] sm:$0xff]
    %v342 = vld [vmem:[%s7 + $0x8] sm:$0xff]
    %v343 = vld [vmem:[%s7 + $0x10] sm:$0xff]
    %v344 = vld [vmem:[%s7 + $0x18] sm:$0xff]
    %346 = vset.pattern.permute.xlu0 0
    %347 = vperm.xlu0 %346, %v341
    %v348 = vpop.permute.xlu0 %347
    %351 = vset.pattern.permute.xlu0 0
    %352 = vperm.xlu0 %351, %v342
    %v353 = vpop.permute.xlu0 %352
    %356 = vset.pattern.permute.xlu0 0
    %357 = vperm.xlu0 %356, %v343
    %v358 = vpop.permute.xlu0 %357
    %361 = vset.pattern.permute.xlu0 0
    %362 = vperm.xlu0 %361, %v344
    %v363 = vpop.permute.xlu0 %362
    %v365 = vmul.f32 %v337, %v348
    %v366 = vmul.f32 %v338, %v353
    %v367 = vmul.f32 %v339, %v358
    %v368 = vmul.f32 %v340, %v363
    %v369 = vadd.f32 %v365, %v366
    %v370 = vadd.f32 %v369, %v367
    %v371 = vadd.f32 %v370, %v368
    %v372 = vrot.slane %v371, 4
    %v373 = vadd.f32 %v371, %v372
    %v374 = vrot.slane %v373, 2
    %v375 = vadd.f32 %v373, %v374
    %v376 = vrot.slane %v375, 1
    %v377 = vadd.f32 %v375, %v376
    %v378 = vld [vmem:[#allocation2] sm:$0x1]
    %380 = vset.pattern.permute.xlu0 0
    %381 = vperm.xlu0 %380, %v378
    %v382 = vpop.permute.xlu0 %381
    %v384 = vlaneseq
    %v385 = vshrl.u32 %v384, 7
    %v386 = vsub.s32 0, %v385
    %v387 = vrot.slane %v382, %v386
    %v388 = vadd.f32 %v377, %v387
    %389 = vst [vmem:[#allocation3] sm:$0x1] %v388
    // Predicated region
    $region38: #{tpu_custom_call.1} parent=1 // pred_check
      _
    $region39: #{tpu_custom_call.1} parent=1 // pred_check_branch
      %391 = sbr.rel (0) target = $region41
    $region40: #{tpu_custom_call.1} parent=1 // pred_region
      %s393 = ssub.s32 16, 16
      %394 = vsyncadd [#allocation4], %s393
      %s396 = sshll.u32 [#allocation3], 4
      %s397 = int_to_ptr.vmem [resolvable:$true] %s396
      %399 = dma.vmem_to_hbm [thread:$0]  %s397, 16, %s9, [#allocation4]
    $region41: #{tpu_custom_call.1} parent=1 // pred_fallthru
      _
    // Predicated region
    $region42: #{tpu_custom_call.1} parent=1 // pred_check
      _
    $region43: #{tpu_custom_call.1} parent=1 // pred_check_branch
      %401 = sbr.rel (0) target = $region45
    $region44: #{tpu_custom_call.1} parent=1 // pred_region
      %402 = dma.done [#allocation4], 16
    $region45: #{tpu_custom_call.1} parent=1 // pred_fallthru
      _
    %403 = vsyncpa [#allocation4], 1

</llo_original>
